<compile_context>
chip_gen: v7x
topology: tpu7x:2x2x1
jax: 0.10.0
libtpu: 0.0.40
codegen_flags: <defaults>
</compile_context>

<pallas_src>
import functools

import jax
import jax.numpy as jnp
import numpy as np
from jax.experimental import pallas as pl
from jax.experimental.pallas import tpu as pltpu

# Constants mirroring the PyTorch module's channel convention
# (MC.NON_SEM_CHANNELS non-semantic channels followed by semantic categories).
NON_SEM_CHANNELS = 4   # obstacles, explored, current agent loc, past agent loc
NUM_CATEGORIES = 4     # self.num_categories
DOWNSCALE = 4          # map_params downscale factor (global -> local resolution)


def _map_features_kernel(local_ref, gwin_ref, out_ref):
    """Assemble map features for one (batch, timestep) grid point.

    local_ref: (1, NS + CAT, HW)        local map, spatial dims flattened
    gwin_ref:  (1, d*d//2, 2*NS, HW)    global non-sem channels; the d*d
                                        pooling-window terms are unrolled on
                                        axis 1 in pairs so each slice is a
                                        sublane-dense (2*NS, HW) slab
    out_ref:   (1, 1, 2*NS + CAT, HW)   one timestep of the feature sequence
    """
    ns = NON_SEM_CHANNELS
    n_pairs = (DOWNSCALE * DOWNSCALE) // 2     # 8 paired window terms

    # local obstacle / explored / agent-location channels (plain copy)
    out_ref[0, 0, 0:ns] = local_ref[0, 0:ns]

    # d x d max-pool of the global non-semantic channels: pairwise tree
    # reduction over the 8 paired window slices (VPU elementwise maxima;
    # critical path 3 levels + 1 final fold instead of 15 serial maxima,
    # and at most ~4 (8, HW) values live at once so no vreg spill).
    terms = [gwin_ref[0, k] for k in range(n_pairs)]         # each (2*NS, HW)
    while len(terms) > 1:
        terms = [jnp.maximum(terms[i], terms[i + 1])
                 for i in range(0, len(terms), 2)]
    paired = terms[0]                                        # (2*NS, HW)
    # fold the even/odd window term that shares each paired slice
    out_ref[0, 0, ns:2 * ns] = jnp.maximum(paired[0:ns], paired[ns:2 * ns])

    # local semantic category channels (plain copy)
    out_ref[0, 0, 2 * ns:] = local_ref[0, ns:]


@functools.partial(jax.jit, static_argnames=("num_steps",))
def get_map_features_seq(local_map, global_map, num_steps):
    """Fused CategoricalMap2D._get_map_features over the whole (B, T) sequence.

    Returns (B, T, 2*NS + CAT, H, W). The Pallas grid is (B, T); the maps are
    t-invariant (update helpers are stubbed), so only the output varies with t.
    """
    B, c_local, H, W = local_map.shape
    ns, d = NON_SEM_CHANNELS, DOWNSCALE
    dd = d * d
    cat = c_local - ns
    feat_ch = 2 * ns + cat
    HW = H * W
    assert global_map.shape[-2:] == (H * d, W * d)

    # Lane-dense flatten of the local map (free metadata reshape).
    local_flat = local_map.reshape(B, c_local, HW)

    # Single XLA copy: unroll each d x d pooling window onto a leading axis AND
    # flatten spatial to the lane-dense H*W minor dim.  Window terms are paired
    # on the sublane axis (2*ns = 8 rows -> fully dense (8,128) tiles), so the
    # same copy serves the window unroll and the lane-dense layout fix.
    g = global_map[:, :ns].reshape(B, ns, H, d, W, d)
    g = jnp.transpose(g, (0, 3, 5, 1, 2, 4))      # (B, d, d, ns, H, W)
    g = g.reshape(B, dd // 2, 2 * ns, HW)         # pair window terms

    out_flat = pl.pallas_call(
        _map_features_kernel,
        out_shape=jax.ShapeDtypeStruct((B, num_steps, feat_ch, HW),
                                       local_map.dtype),
        grid=(B, num_steps),
        in_specs=[
            pl.BlockSpec((1, c_local, HW), lambda b, t: (b, 0, 0)),
            pl.BlockSpec((1, dd // 2, 2 * ns, HW), lambda b, t: (b, 0, 0, 0)),
        ],
        out_specs=pl.BlockSpec((1, 1, feat_ch, HW), lambda b, t: (b, t, 0, 0)),
        compiler_params=pltpu.CompilerParams(
            dimension_semantics=("parallel", "parallel")),
    )(local_flat, g)
    # TODO(synk): for production map sizes (e.g. 240x240 local maps) add a
    # spatial tile axis to the grid or raise vmem_limit_bytes on v7x
    # (64 MiB physical / 32 MiB default scoped VMEM).
    return out_flat.reshape(B, num_steps, feat_ch, H, W)


class CategoricalMap2D:
    """JAX/Pallas port of the (stateless) PyTorch CategoricalMap2D module."""

    def __init__(self, frame_h, frame_w, cam_h, hfov, categories, map_size,
                 resolution, vision_range, explore_radius, proximity_radius,
                 downscale=4):
        self.screen_h = frame_h
        self.screen_w = frame_w
        self.num_categories = categories
        self.vision_range = vision_range
        self.explore_radius = explore_radius
        self.proximity_radius = proximity_radius
        self.downscale = downscale

    def forward(self, obs_seq, pose_delta, done_flags, update_flags, cam_poses,
                init_local_map, init_global_map, init_local_pose,
                init_global_pose, init_bounds, init_origins,
                obstacle_locs=None, free_locs=None, blacklist=False):
        B, T = obs_seq.shape[:2]

        local_map = init_local_map
        global_map = init_global_map
        local_pose = init_local_pose
        global_pose = init_global_pose
        bounds = init_bounds
        origins = init_origins

        # TODO(synk): init_map_and_pose_for_env, _update_local_map and
        # _update_global_env depend on external geometry helpers (camera
        # projection, pose integration, map registration) not defined in the
        # provided module; maps and poses pass through unchanged here. Once
        # those land, thread per-timestep maps into get_map_features_seq
        # (inputs become (B, T, ...) and the in_spec index maps pick up t).

        # Map features for all timesteps in a single fused Pallas grid.
        seq_feats = get_map_features_seq(local_map, global_map, T)

        seq_loc_pose = jnp.broadcast_to(local_pose[:, None], (B, T, 3))
        seq_glob_pose = jnp.broadcast_to(global_pose[:, None], (B, T, 3))
        seq_bounds = jnp.broadcast_to(bounds[:, None], (B, T, 4)).astype(jnp.int32)
        seq_origins = jnp.broadcast_to(origins[:, None], (B, T, 3))

        return (seq_feats, local_map, global_map, seq_loc_pose,
                seq_glob_pose, seq_bounds, seq_origins)


def _ref_map_features(local_map, global_map):
    """Pure-JAX reference for _get_map_features (for correctness check)."""
    ns, d = NON_SEM_CHANNELS, DOWNSCALE
    B, _, H, W = local_map.shape
    pooled = global_map[:, :ns].reshape(B, ns, H, d, W, d).max(axis=(3, 5))
    return jnp.concatenate([local_map[:, :ns], pooled, local_map[:, ns:]], axis=1)


if __name__ == "__main__":
    key = jax.random.PRNGKey(0)
    B, T = 2, 4
    H, W = 32, 32                       # local map spatial size
    GH, GW = H * DOWNSCALE, W * DOWNSCALE
    map_ch = NON_SEM_CHANNELS + NUM_CATEGORIES
    obs_ch = 4 + NUM_CATEGORIES         # rgb + depth + per-category masks

    ks = jax.random.split(key, 8)
    obs_seq = jax.random.uniform(ks[0], (B, T, obs_ch, 16, 16), jnp.float32)
    pose_delta = jax.random.normal(ks[1], (B, T, 3), jnp.float32)
    done_flags = jnp.zeros((B, T), jnp.bool_)
    update_flags = jnp.ones((B, T), jnp.bool_)
    cam_poses = jax.random.normal(ks[2], (B, T, 4, 4), jnp.float32)
    init_local_map = jax.random.uniform(ks[3], (B, map_ch, H, W), jnp.float32)
    init_global_map = jax.random.uniform(ks[4], (B, map_ch, GH, GW), jnp.float32)
    init_local_pose = jax.random.normal(ks[5], (B, 3), jnp.float32)
    init_global_pose = jax.random.normal(ks[6], (B, 3), jnp.float32)
    init_bounds = jnp.tile(jnp.array([[0, H, 0, W]], jnp.int32), (B, 1))
    init_origins = jax.random.normal(ks[7], (B, 3), jnp.float32)

    mod = CategoricalMap2D(frame_h=16, frame_w=16, cam_h=0.88, hfov=79.0,
                           categories=NUM_CATEGORIES, map_size=480,
                           resolution=5, vision_range=100,
                           explore_radius=150, proximity_radius=50,
                           downscale=DOWNSCALE)

    outs = mod.forward(obs_seq, pose_delta, done_flags, update_flags, cam_poses,
                       init_local_map, init_global_map, init_local_pose,
                       init_global_pose, init_bounds, init_origins)
    outs = jax.block_until_ready(outs)
    seq_feats = outs[0]

    # correctness check of the Pallas hot path against a pure-JAX reference
    ref = _ref_map_features(init_local_map, init_global_map)
    for t in range(T):
        np.testing.assert_allclose(np.asarray(seq_feats[:, t]),
                                   np.asarray(ref), rtol=1e-6, atol=1e-6)
    assert seq_feats.shape == (B, T, 2 * NON_SEM_CHANNELS + NUM_CATEGORIES, H, W)
    assert outs[5].dtype == jnp.int32

    print("KERNEL_OK")
</pallas_src>

<mosaic_0001>
module attributes {stable_mosaic.version = 11 : i64} {
  func.func @_map_features_kernel(%arg0: i32, %arg1: i32, %arg2: memref<1x8x1024xf32, #tpu.memory_space<vmem>>, %arg3: memref<1x8x8x1024xf32, #tpu.memory_space<vmem>>, %arg4: memref<1x1x12x1024xf32, #tpu.memory_space<vmem>>) attributes {dimension_semantics = [#tpu.dimension_semantics<parallel>, #tpu.dimension_semantics<parallel>], iteration_bounds = array<i64: 2, 4>, scalar_prefetch = 0 : i64, scratch_operands = 0 : i64, tpu.core_type = #tpu.core_type<tc>, window_params = [{transform_indices = @transform_0, window_bounds = array<i64: 1, 8, 1024>}, {transform_indices = @transform_1, window_bounds = array<i64: 1, 8, 8, 1024>}, {transform_indices = @transform_2, window_bounds = array<i64: 1, 1, 12, 1024>}]} {
    %c0 = arith.constant 0 : index
    %c0_0 = arith.constant 0 : index
    %c0_1 = arith.constant 0 : index
    %0 = vector.load %arg2[%c0, %c0_0, %c0_1] : memref<1x8x1024xf32, #tpu.memory_space<vmem>>, vector<1x4x1024xf32>
    %1 = vector.shape_cast %0 : vector<1x4x1024xf32> to vector<4x1024xf32>
    %c0_2 = arith.constant 0 : index
    %c0_3 = arith.constant 0 : index
    %c0_4 = arith.constant 0 : index
    %c0_5 = arith.constant 0 : index
    %2 = vector.load %arg4[%c0_2, %c0_3, %c0_4, %c0_5] : memref<1x1x12x1024xf32, #tpu.memory_space<vmem>>, vector<1x1x4x1024xf32>
    %3 = vector.shape_cast %2 : vector<1x1x4x1024xf32> to vector<4x1024xf32>
    %4 = vector.shape_cast %1 : vector<4x1024xf32> to vector<1x1x4x1024xf32>
    tpu.vector_store %arg4[%c0_2, %c0_3, %c0_4, %c0_5], %4 {strides = array<i32>} : memref<1x1x12x1024xf32, #tpu.memory_space<vmem>>, vector<1x1x4x1024xf32>,
    %c0_6 = arith.constant 0 : index
    %c0_7 = arith.constant 0 : index
    %c0_8 = arith.constant 0 : index
    %c0_9 = arith.constant 0 : index
    %5 = vector.load %arg3[%c0_6, %c0_7, %c0_8, %c0_9] : memref<1x8x8x1024xf32, #tpu.memory_space<vmem>>, vector<1x1x8x1024xf32>
    %6 = vector.shape_cast %5 : vector<1x1x8x1024xf32> to vector<8x1024xf32>
    %c0_10 = arith.constant 0 : index
    %c1 = arith.constant 1 : index
    %c0_11 = arith.constant 0 : index
    %c0_12 = arith.constant 0 : index
    %7 = vector.load %arg3[%c0_10, %c1, %c0_11, %c0_12] : memref<1x8x8x1024xf32, #tpu.memory_space<vmem>>, vector<1x1x8x1024xf32>
    %8 = vector.shape_cast %7 : vector<1x1x8x1024xf32> to vector<8x1024xf32>
    %c0_13 = arith.constant 0 : index
    %c2 = arith.constant 2 : index
    %c0_14 = arith.constant 0 : index
    %c0_15 = arith.constant 0 : index
    %9 = vector.load %arg3[%c0_13, %c2, %c0_14, %c0_15] : memref<1x8x8x1024xf32, #tpu.memory_space<vmem>>, vector<1x1x8x1024xf32>
    %10 = vector.shape_cast %9 : vector<1x1x8x1024xf32> to vector<8x1024xf32>
    %c0_16 = arith.constant 0 : index
    %c3 = arith.constant 3 : index
    %c0_17 = arith.constant 0 : index
    %c0_18 = arith.constant 0 : index
    %11 = vector.load %arg3[%c0_16, %c3, %c0_17, %c0_18] : memref<1x8x8x1024xf32, #tpu.memory_space<vmem>>, vector<1x1x8x1024xf32>
    %12 = vector.shape_cast %11 : vector<1x1x8x1024xf32> to vector<8x1024xf32>
    %c0_19 = arith.constant 0 : index
    %c4 = arith.constant 4 : index
    %c0_20 = arith.constant 0 : index
    %c0_21 = arith.constant 0 : index
    %13 = vector.load %arg3[%c0_19, %c4, %c0_20, %c0_21] : memref<1x8x8x1024xf32, #tpu.memory_space<vmem>>, vector<1x1x8x1024xf32>
    %14 = vector.shape_cast %13 : vector<1x1x8x1024xf32> to vector<8x1024xf32>
    %c0_22 = arith.constant 0 : index
    %c5 = arith.constant 5 : index
    %c0_23 = arith.constant 0 : index
    %c0_24 = arith.constant 0 : index
    %15 = vector.load %arg3[%c0_22, %c5, %c0_23, %c0_24] : memref<1x8x8x1024xf32, #tpu.memory_space<vmem>>, vector<1x1x8x1024xf32>
    %16 = vector.shape_cast %15 : vector<1x1x8x1024xf32> to vector<8x1024xf32>
    %c0_25 = arith.constant 0 : index
    %c6 = arith.constant 6 : index
    %c0_26 = arith.constant 0 : index
    %c0_27 = arith.constant 0 : index
    %17 = vector.load %arg3[%c0_25, %c6, %c0_26, %c0_27] : memref<1x8x8x1024xf32, #tpu.memory_space<vmem>>, vector<1x1x8x1024xf32>
    %18 = vector.shape_cast %17 : vector<1x1x8x1024xf32> to vector<8x1024xf32>
    %c0_28 = arith.constant 0 : index
    %c7 = arith.constant 7 : index
    %c0_29 = arith.constant 0 : index
    %c0_30 = arith.constant 0 : index
    %19 = vector.load %arg3[%c0_28, %c7, %c0_29, %c0_30] : memref<1x8x8x1024xf32, #tpu.memory_space<vmem>>, vector<1x1x8x1024xf32>
    %20 = vector.shape_cast %19 : vector<1x1x8x1024xf32> to vector<8x1024xf32>
    %21 = arith.maximumf %6, %8 : vector<8x1024xf32>
    %22 = arith.maximumf %10, %12 : vector<8x1024xf32>
    %23 = arith.maximumf %14, %16 : vector<8x1024xf32>
    %24 = arith.maximumf %18, %20 : vector<8x1024xf32>
    %25 = arith.maximumf %21, %22 : vector<8x1024xf32>
    %26 = arith.maximumf %23, %24 : vector<8x1024xf32>
    %27 = arith.maximumf %25, %26 : vector<8x1024xf32>
    %28 = vector.extract_strided_slice %27 {offsets = [0, 0], sizes = [4, 1024], strides = [1, 1]} : vector<8x1024xf32> to vector<4x1024xf32>
    %29 = vector.extract_strided_slice %27 {offsets = [4, 0], sizes = [4, 1024], strides = [1, 1]} : vector<8x1024xf32> to vector<4x1024xf32>
    %30 = arith.maximumf %28, %29 : vector<4x1024xf32>
    %c0_31 = arith.constant 0 : index
    %c0_32 = arith.constant 0 : index
    %c4_33 = arith.constant 4 : index
    %c0_34 = arith.constant 0 : index
    %31 = vector.load %arg4[%c0_31, %c0_32, %c4_33, %c0_34] : memref<1x1x12x1024xf32, #tpu.memory_space<vmem>>, vector<1x1x4x1024xf32>
    %32 = vector.shape_cast %31 : vector<1x1x4x1024xf32> to vector<4x1024xf32>
    %33 = vector.shape_cast %30 : vector<4x1024xf32> to vector<1x1x4x1024xf32>
    tpu.vector_store %arg4[%c0_31, %c0_32, %c4_33, %c0_34], %33 {strides = array<i32>} : memref<1x1x12x1024xf32, #tpu.memory_space<vmem>>, vector<1x1x4x1024xf32>,
    %c0_35 = arith.constant 0 : index
    %c4_36 = arith.constant 4 : index
    %c0_37 = arith.constant 0 : index
    %34 = vector.load %arg2[%c0_35, %c4_36, %c0_37] : memref<1x8x1024xf32, #tpu.memory_space<vmem>>, vector<1x4x1024xf32>
    %35 = vector.shape_cast %34 : vector<1x4x1024xf32> to vector<4x1024xf32>
    %c0_38 = arith.constant 0 : index
    %c0_39 = arith.constant 0 : index
    %c8 = arith.constant 8 : index
    %c0_40 = arith.constant 0 : index
    %36 = vector.load %arg4[%c0_38, %c0_39, %c8, %c0_40] : memref<1x1x12x1024xf32, #tpu.memory_space<vmem>>, vector<1x1x4x1024xf32>
    %37 = vector.shape_cast %36 : vector<1x1x4x1024xf32> to vector<4x1024xf32>
    %38 = vector.shape_cast %35 : vector<4x1024xf32> to vector<1x1x4x1024xf32>
    tpu.vector_store %arg4[%c0_38, %c0_39, %c8, %c0_40], %38 {strides = array<i32>} : memref<1x1x12x1024xf32, #tpu.memory_space<vmem>>, vector<1x1x4x1024xf32>,
    return
  }
  func.func @transform_0(%arg0: i32, %arg1: i32) -> (i32, i32, i32) {
    %c0_i32 = arith.constant 0 : i32
    %c0_i32_0 = arith.constant 0 : i32
    %c0_i32_1 = arith.constant 0 : i32
    return %arg0, %c0_i32, %c0_i32_0 : i32, i32, i32
  }
  func.func @transform_1(%arg0: i32, %arg1: i32) -> (i32, i32, i32, i32) {
    %c0_i32 = arith.constant 0 : i32
    %c0_i32_0 = arith.constant 0 : i32
    %c0_i32_1 = arith.constant 0 : i32
    %c0_i32_2 = arith.constant 0 : i32
    return %arg0, %c0_i32, %c0_i32_0, %c0_i32_1 : i32, i32, i32, i32
  }
  func.func @transform_2(%arg0: i32, %arg1: i32) -> (i32, i32, i32, i32) {
    %c0_i32 = arith.constant 0 : i32
    %c0_i32_0 = arith.constant 0 : i32
    %c0_i32_1 = arith.constant 0 : i32
    return %arg0, %arg1, %c0_i32, %c0_i32_0 : i32, i32, i32, i32
  }
}

</mosaic_0001>

<llo_original>
// kernel: get_map_features_seq.1
$region0: #{get_map_features_seq.1}
  #allocation0 [shape = 'u32[]', space=smem, size = 0x4, offset = 0x4, fixed_abs, tag = 'smem constant byte address 0x4 - core index']
  #allocation1 [shape = 'u32[144,128]{1,0:T(1,128)}', space=vmem, size = 0x12000, scoped, tag = 'internal scratch']
  %s0 = inlined_call_operand.vmem [shape: f32[2,8,1024], index: 0, kind: input, shape index: {}]
  %s1 = inlined_call_operand.vmem [shape: f32[2,8,8,1024], index: 1, kind: input, shape index: {}]
  %s2 = inlined_call_operand.vmem [shape: f32[2,4,12,1024], index: 2, kind: output, shape index: {}]
  %s3 = sld [smem:[#allocation0]]
  $region41: #{get_map_features_seq.1} parent=0
    _
  %s5 = ssub.s32 1, %s3
  %s6 = scalar_select 0, %s5, %s3
  loop: start=0, step=1, limit=10
  $region2: #{get_map_features_seq.1} parent=0 // loop_pre_header
    _
  $region3: #{get_map_features_seq.1} parent=0 // loop_header
    %s8 = sphi 0, %s12
    %p9 = scmp.ge.s32.totalorder %s8, 10
    %s15 = sphi 0, %s27
    %s16 = sphi 0, %s23
    %s17 = sphi 0, %s15
    %s18 = sphi 0, %s16
    %s19 = sphi 0, %s17
    %s20 = sphi 0, %s18
    %s30 = sphi 0, %s32
    %s33 = sphi 0, %s30
    %s34 = sphi 0, %s33
    %s50 = sphi 0, %s34
    %s56 = sphi 0, %s58
    %s59 = sphi 0, %s56
    %s60 = sphi 0, %s59
    %s76 = sphi 0, %s60
    %s84 = sphi 0, %s86
    %s87 = sphi 0, %s84
    %s88 = sphi 0, %s87
    %s104 = sphi 0, %s88
  $region4: #{get_map_features_seq.1} parent=0 // loop_header_branch
    %11 = sbr.rel (%p9) target = $region8
  $region5: #{get_map_features_seq.1} parent=0 // loop_body
    %s13 = ssub.s32 %s8, 1
    %s14 = ssub.s32 %s8, 2
    %s21 = sadd.s32 1, %s16
    %p22 = scmp.ge.s32.totalorder %s21, 4
    %s23 = scalar_select %p22, 0, %s21
    %s24 = sadd.s32 1, %s15
    %s25 = scalar_select %p22, %s24, %s15
    %p26 = scmp.ge.s32.totalorder %s25, 2
    %s27 = scalar_select %p26, 0, %s25
    %s28 = ssub.s32 %s15, %s27
    %p29 = scmp.eq.s32.totalorder %s28, 0
    %s31 = sadd.s32 %s30, 1
    %s32 = scalar_select %p29, %s30, %s31
    %p35 = pneg %p29
    %p36 = scmp.eq.s32.totalorder %s8, 7
    %p37 = por %p35, %p36
    %p38 = scmp.ne.s32.totalorder %s30, %s33
    %p39 = scmp.eq.s32.totalorder %s8, 0
    %p40 = por %p38, %p39
    %p41 = scmp.ne.s32.totalorder %s30, %s33
    %p42 = scmp.eq.s32.totalorder %s13, 7
    %p43 = por %p41, %p42
    %p44 = scmp.ne.s32.totalorder %s33, %s34
    %p45 = scmp.eq.s32.totalorder %s13, 0
    %p46 = por %p44, %p45
    %p47 = scmp.ne.s32.totalorder %s33, %s34
    %p48 = scmp.eq.s32.totalorder %s14, 7
    %p49 = por %p47, %p48
    %p51 = scmp.ne.s32.totalorder %s34, %s50
    %p52 = scmp.eq.s32.totalorder %s14, 0
    %p53 = por %p51, %p52
    %s54 = ssub.s32 %s15, %s27
    %p55 = scmp.eq.s32.totalorder %s54, 0
    %s57 = sadd.s32 %s56, 1
    %s58 = scalar_select %p55, %s56, %s57
    %p61 = pneg %p55
    %p62 = scmp.eq.s32.totalorder %s8, 7
    %p63 = por %p61, %p62
    %p64 = scmp.ne.s32.totalorder %s56, %s59
    %p65 = scmp.eq.s32.totalorder %s8, 0
    %p66 = por %p64, %p65
    %p67 = scmp.ne.s32.totalorder %s56, %s59
    %p68 = scmp.eq.s32.totalorder %s13, 7
    %p69 = por %p67, %p68
    %p70 = scmp.ne.s32.totalorder %s59, %s60
    %p71 = scmp.eq.s32.totalorder %s13, 0
    %p72 = por %p70, %p71
    %p73 = scmp.ne.s32.totalorder %s59, %s60
    %p74 = scmp.eq.s32.totalorder %s14, 7
    %p75 = por %p73, %p74
    %p77 = scmp.ne.s32.totalorder %s60, %s76
    %p78 = scmp.eq.s32.totalorder %s14, 0
    %p79 = por %p77, %p78
    %s80 = ssub.s32 %s15, %s27
    %s81 = ssub.s32 %s16, %s23
    %s82 = sor.u32 %s80, %s81
    %p83 = scmp.eq.s32.totalorder %s82, 0
    %s85 = sadd.s32 %s84, 1
    %s86 = scalar_select %p83, %s84, %s85
    %p89 = pneg %p83
    %p90 = scmp.eq.s32.totalorder %s8, 7
    %p91 = por %p89, %p90
    %p92 = scmp.ne.s32.totalorder %s84, %s87
    %p93 = scmp.eq.s32.totalorder %s8, 0
    %p94 = por %p92, %p93
    %p95 = scmp.ne.s32.totalorder %s84, %s87
    %p96 = scmp.eq.s32.totalorder %s13, 7
    %p97 = por %p95, %p96
    %p98 = scmp.ne.s32.totalorder %s87, %s88
    %p99 = scmp.eq.s32.totalorder %s13, 0
    %p100 = por %p98, %p99
    %p101 = scmp.ne.s32.totalorder %s87, %s88
    %p102 = scmp.eq.s32.totalorder %s14, 7
    %p103 = por %p101, %p102
    %p105 = scmp.ne.s32.totalorder %s88, %s104
    %p106 = scmp.eq.s32.totalorder %s14, 0
    %p107 = por %p105, %p106
    %p108 = scmp.le.s32.totalorder 1, %s8
    %p109 = scmp.lt.s32.totalorder %s8, 9
    %p110 = pnand %p108, %p109
    %p111 = pneg %p110
    // Predicated region
    $region9: #{get_map_features_seq.1} parent=5 // pred_check
      _
    $region10: #{get_map_features_seq.1} parent=5 // pred_check_branch
      %113 = sbr.rel (%p110) target = $region12
    $region11: #{get_map_features_seq.1} parent=5 // pred_region
      %s114 = ssub.s32 %s8, 1
    $region12: #{get_map_features_seq.1} parent=5 // pred_fallthru
      _
    %p115 = scmp.lt.s32.totalorder %s8, 8
    // Predicated region
    $region13: #{get_map_features_seq.1} parent=5 // pred_check
      %p116 = pneg %p115
    $region14: #{get_map_features_seq.1} parent=5 // pred_check_branch
      %118 = sbr.rel (%p116) target = $region16
    $region15: #{get_map_features_seq.1} parent=5 // pred_region
      // Predicated region
      $region17: #{get_map_features_seq.1} parent=15 // pred_check
        %p119 = pneg %p40
      $region18: #{get_map_features_seq.1} parent=15 // pred_check_branch
        %121 = sbr.rel (%p119) target = $region20
      $region19: #{get_map_features_seq.1} parent=15 // pred_region
        %p122 = scmp.lt.s32.totalorder %s15, 1
        %s123 = scalar_select %p122, %s15, 1
        %s124 = smul.addr %s123, 8
        %s125 = smul.addr %s124, 8
        %s126 = scalar_lea.vmem %s0, %s125
      $region20: #{get_map_features_seq.1} parent=15 // pred_fallthru
        _
      // Predicated region
      $region21: #{get_map_features_seq.1} parent=15 // pred_check
        %p127 = pneg %p66
      $region22: #{get_map_features_seq.1} parent=15 // pred_check_branch
        %129 = sbr.rel (%p127) target = $region24
      $region23: #{get_map_features_seq.1} parent=15 // pred_region
        %p130 = scmp.lt.s32.totalorder %s15, 1
        %s131 = scalar_select %p130, %s15, 1
        %s132 = smul.addr %s131, 64
        %s133 = smul.addr %s132, 8
        %s134 = scalar_lea.vmem %s1, %s133
      $region24: #{get_map_features_seq.1} parent=15 // pred_fallthru
        _
    $region16: #{get_map_features_seq.1} parent=5 // pred_fallthru
      _
    %p135 = scmp.le.s32.totalorder 1, %s8
    %p136 = scmp.lt.s32.totalorder %s8, 9
    %p137 = pnand %p135, %p136
    %p138 = pneg %p137
    // Predicated region
    $region25: #{get_map_features_seq.1} parent=5 // pred_check
      _
    $region26: #{get_map_features_seq.1} parent=5 // pred_check_branch
      %140 = sbr.rel (%p137) target = $region28
    $region27: #{get_map_features_seq.1} parent=5 // pred_region
      %s141 = ssub.s32 %s8, 1
      %p142 = scmp.lt.s32.totalorder %s17, 1
      %s143 = scalar_select %p142, %s17, 1
      %s144 = smul.addr %s143, 8
      %s145 = smul.addr %s144, 8
      %s146 = scalar_lea.vmem %s0, %s145
      %p147 = pneg %p46
      %p148 = pneg %p43
      %p149 = scmp.lt.s32.totalorder %s17, 1
      %s150 = scalar_select %p149, %s17, 1
      %s151 = smul.addr %s150, 64
      %s152 = smul.addr %s151, 8
      %s153 = scalar_lea.vmem %s1, %s152
      %p154 = pneg %p72
      %p155 = pneg %p69
      %p156 = pneg %p100
      %p157 = pneg %p97
      %p158 = scmp.lt.s32.totalorder %s17, 1
      %s159 = scalar_select %p158, %s17, 1
      %p160 = scmp.lt.s32.totalorder %s18, 3
      %s161 = scalar_select %p160, %s18, 3
      %s162 = smul.addr %s161, 16
      %s163 = smul.addr %s159, 64
      %s164 = sadd.s32 %s162, %s163
      %s165 = smul.addr %s164, 8
      %s166 = scalar_lea.vmem %s2, %s165
      %p167 = scmp.lt.s32.totalorder %s17, 1
      %s168 = scalar_select %p167, %s17, 1
      %s169 = smul.addr %s168, 8
      %s170 = smul.addr %s169, 8
      %s171 = scalar_lea.vmem %s0, %s170
      %p172 = scmp.lt.s32.totalorder %s17, 1
      %s173 = scalar_select %p172, %s17, 1
      %s174 = smul.addr %s173, 64
      %s175 = smul.addr %s174, 8
      %s176 = scalar_lea.vmem %s1, %s175
      %p177 = scmp.lt.s32.totalorder %s17, 1
      %s178 = scalar_select %p177, %s17, 1
      %p179 = scmp.lt.s32.totalorder %s18, 3
      %s180 = scalar_select %p179, %s18, 3
      %s181 = smul.addr %s180, 16
      %s182 = smul.addr %s178, 64
      %s183 = sadd.s32 %s181, %s182
      %s184 = smul.addr %s183, 8
      %s185 = scalar_lea.vmem %s2, %s184
      %v186 = vld [vmem:[%s171] sm:$0xf]
      %v187 = vld [vmem:[%s171 + $0x8] sm:$0xf]
      %v188 = vld [vmem:[%s171 + $0x10] sm:$0xf]
      %v189 = vld [vmem:[%s171 + $0x18] sm:$0xf]
      %v190 = vld [vmem:[%s171 + $0x20] sm:$0xf]
      %v191 = vld [vmem:[%s171 + $0x28] sm:$0xf]
      %v192 = vld [vmem:[%s171 + $0x30] sm:$0xf]
      %v193 = vld [vmem:[%s171 + $0x38] sm:$0xf]
      %194 = vst [vmem:[%s185] sm:$0xf] %v186
      %195 = vst [vmem:[%s185 + $0x8] sm:$0xf] %v187
      %196 = vst [vmem:[%s185 + $0x10] sm:$0xf] %v188
      %197 = vst [vmem:[%s185 + $0x18] sm:$0xf] %v189
      %198 = vst [vmem:[%s185 + $0x20] sm:$0xf] %v190
      %199 = vst [vmem:[%s185 + $0x28] sm:$0xf] %v191
      %200 = vst [vmem:[%s185 + $0x30] sm:$0xf] %v192
      %201 = vst [vmem:[%s185 + $0x38] sm:$0xf] %v193
      %v202 = vld [vmem:[%s176] sm:$0xff]
      %v203 = vld [vmem:[%s176 + $0x8] sm:$0xff]
      %v204 = vld [vmem:[%s176 + $0x10] sm:$0xff]
      %v205 = vld [vmem:[%s176 + $0x18] sm:$0xff]
      %v206 = vld [vmem:[%s176 + $0x20] sm:$0xff]
      %v207 = vld [vmem:[%s176 + $0x28] sm:$0xff]
      %v208 = vld [vmem:[%s176 + $0x30] sm:$0xff]
      %v209 = vld [vmem:[%s176 + $0x38] sm:$0xff]
      %s210 = scalar_lea.vmem %s176, 64
      %v211 = vld [vmem:[%s210] sm:$0xff]
      %v212 = vld [vmem:[%s210 + $0x8] sm:$0xff]
      %v213 = vld [vmem:[%s210 + $0x10] sm:$0xff]
      %v214 = vld [vmem:[%s210 + $0x18] sm:$0xff]
      %v215 = vld [vmem:[%s210 + $0x20] sm:$0xff]
      %v216 = vld [vmem:[%s210 + $0x28] sm:$0xff]
      %v217 = vld [vmem:[%s210 + $0x30] sm:$0xff]
      %v218 = vld [vmem:[%s210 + $0x38] sm:$0xff]
      %s219 = scalar_lea.vmem %s176, 128
      %v220 = vld [vmem:[%s219] sm:$0xff]
      %v221 = vld [vmem:[%s219 + $0x8] sm:$0xff]
      %v222 = vld [vmem:[%s219 + $0x10] sm:$0xff]
      %v223 = vld [vmem:[%s219 + $0x18] sm:$0xff]
      %v224 = vld [vmem:[%s219 + $0x20] sm:$0xff]
      %v225 = vld [vmem:[%s219 + $0x28] sm:$0xff]
      %v226 = vld [vmem:[%s219 + $0x30] sm:$0xff]
      %v227 = vld [vmem:[%s219 + $0x38] sm:$0xff]
      %s228 = scalar_lea.vmem %s176, 192
      %v229 = vld [vmem:[%s228] sm:$0xff]
      %v230 = vld [vmem:[%s228 + $0x8] sm:$0xff]
      %v231 = vld [vmem:[%s228 + $0x10] sm:$0xff]
      %v232 = vld [vmem:[%s228 + $0x18] sm:$0xff]
      %v233 = vld [vmem:[%s228 + $0x20] sm:$0xff]
      %v234 = vld [vmem:[%s228 + $0x28] sm:$0xff]
      %v235 = vld [vmem:[%s228 + $0x30] sm:$0xff]
      %v236 = vld [vmem:[%s228 + $0x38] sm:$0xff]
      %s237 = scalar_lea.vmem %s176, 256
      %v238 = vld [vmem:[%s237] sm:$0xff]
      %v239 = vld [vmem:[%s237 + $0x8] sm:$0xff]
      %v240 = vld [vmem:[%s237 + $0x10] sm:$0xff]
      %v241 = vld [vmem:[%s237 + $0x18] sm:$0xff]
      %v242 = vld [vmem:[%s237 + $0x20] sm:$0xff]
      %v243 = vld [vmem:[%s237 + $0x28] sm:$0xff]
      %v244 = vld [vmem:[%s237 + $0x30] sm:$0xff]
      %v245 = vld [vmem:[%s237 + $0x38] sm:$0xff]
      %s246 = scalar_lea.vmem %s176, 320
      %v247 = vld [vmem:[%s246] sm:$0xff]
      %v248 = vld [vmem:[%s246 + $0x8] sm:$0xff]
      %v249 = vld [vmem:[%s246 + $0x10] sm:$0xff]
      %v250 = vld [vmem:[%s246 + $0x18] sm:$0xff]
      %v251 = vld [vmem:[%s246 + $0x20] sm:$0xff]
      %v252 = vld [vmem:[%s246 + $0x28] sm:$0xff]
      %v253 = vld [vmem:[%s246 + $0x30] sm:$0xff]
      %v254 = vld [vmem:[%s246 + $0x38] sm:$0xff]
      %s255 = scalar_lea.vmem %s176, 384
      %v256 = vld [vmem:[%s255] sm:$0xff]
      %v257 = vld [vmem:[%s255 + $0x8] sm:$0xff]
      %v258 = vld [vmem:[%s255 + $0x10] sm:$0xff]
      %v259 = vld [vmem:[%s255 + $0x18] sm:$0xff]
      %v260 = vld [vmem:[%s255 + $0x20] sm:$0xff]
      %v261 = vld [vmem:[%s255 + $0x28] sm:$0xff]
      %v262 = vld [vmem:[%s255 + $0x30] sm:$0xff]
      %v263 = vld [vmem:[%s255 + $0x38] sm:$0xff]
      %s264 = scalar_lea.vmem %s176, 448
      %v265 = vld [vmem:[%s264] sm:$0xff]
      %v266 = vld [vmem:[%s264 + $0x8] sm:$0xff]
      %v267 = vld [vmem:[%s264 + $0x10] sm:$0xff]
      %v268 = vld [vmem:[%s264 + $0x18] sm:$0xff]
      %v269 = vld [vmem:[%s264 + $0x20] sm:$0xff]
      %v270 = vld [vmem:[%s264 + $0x28] sm:$0xff]
      %v271 = vld [vmem:[%s264 + $0x30] sm:$0xff]
      %v272 = vld [vmem:[%s264 + $0x38] sm:$0xff]
      %v273 = vmax.f32 %v202, %v211
      %v274 = vmax.f32 %v203, %v212
      %v275 = vmax.f32 %v204, %v213
      %v276 = vmax.f32 %v205, %v214
      %v277 = vmax.f32 %v206, %v215
      %v278 = vmax.f32 %v207, %v216
      %v279 = vmax.f32 %v208, %v217
      %v280 = vmax.f32 %v209, %v218
      %v281 = vmax.f32 %v220, %v229
      %v282 = vmax.f32 %v221, %v230
      %v283 = vmax.f32 %v222, %v231
      %v284 = vmax.f32 %v223, %v232
      %v285 = vmax.f32 %v224, %v233
      %v286 = vmax.f32 %v225, %v234
      %v287 = vmax.f32 %v226, %v235
      %v288 = vmax.f32 %v227, %v236
      %v289 = vmax.f32 %v238, %v247
      %v290 = vmax.f32 %v239, %v248
      %v291 = vmax.f32 %v240, %v249
      %v292 = vmax.f32 %v241, %v250
      %v293 = vmax.f32 %v242, %v251
      %v294 = vmax.f32 %v243, %v252
      %v295 = vmax.f32 %v244, %v253
      %v296 = vmax.f32 %v245, %v254
      %v297 = vmax.f32 %v256, %v265
      %v298 = vmax.f32 %v257, %v266
      %v299 = vmax.f32 %v258, %v267
      %v300 = vmax.f32 %v259, %v268
      %v301 = vmax.f32 %v260, %v269
      %v302 = vmax.f32 %v261, %v270
      %v303 = vmax.f32 %v262, %v271
      %v304 = vmax.f32 %v263, %v272
      %v305 = vmax.f32 %v273, %v281
      %v306 = vmax.f32 %v274, %v282
      %v307 = vmax.f32 %v275, %v283
      %v308 = vmax.f32 %v276, %v284
      %v309 = vmax.f32 %v277, %v285
      %v310 = vmax.f32 %v278, %v286
      %v311 = vmax.f32 %v279, %v287
      %v312 = vmax.f32 %v280, %v288
      %v313 = vmax.f32 %v289, %v297
      %v314 = vmax.f32 %v290, %v298
      %v315 = vmax.f32 %v291, %v299
      %v316 = vmax.f32 %v292, %v300
      %v317 = vmax.f32 %v293, %v301
      %v318 = vmax.f32 %v294, %v302
      %v319 = vmax.f32 %v295, %v303
      %v320 = vmax.f32 %v296, %v304
      %v321 = vmax.f32 %v305, %v313
      %v322 = vmax.f32 %v306, %v314
      %v323 = vmax.f32 %v307, %v315
      %v324 = vmax.f32 %v308, %v316
      %v325 = vmax.f32 %v309, %v317
      %v326 = vmax.f32 %v310, %v318
      %v327 = vmax.f32 %v311, %v319
      %v328 = vmax.f32 %v312, %v320
      %v337 = vrot.slane %v321, 4
      %v338 = vrot.slane %v322, 4
      %v339 = vrot.slane %v323, 4
      %v340 = vrot.slane %v324, 4
      %v341 = vrot.slane %v325, 4
      %v342 = vrot.slane %v326, 4
      %v343 = vrot.slane %v327, 4
      %v344 = vrot.slane %v328, 4
      %v353 = vmax.f32 %v321, %v337
      %v354 = vmax.f32 %v322, %v338
      %v355 = vmax.f32 %v323, %v339
      %v356 = vmax.f32 %v324, %v340
      %v357 = vmax.f32 %v325, %v341
      %v358 = vmax.f32 %v326, %v342
      %v359 = vmax.f32 %v327, %v343
      %v360 = vmax.f32 %v328, %v344
      %v369 = vrot.slane %v353, 4
      %v370 = vrot.slane %v354, 4
      %v371 = vrot.slane %v355, 4
      %v372 = vrot.slane %v356, 4
      %v373 = vrot.slane %v357, 4
      %v374 = vrot.slane %v358, 4
      %v375 = vrot.slane %v359, 4
      %v376 = vrot.slane %v360, 4
      %385 = vst [vmem:[%s185] sm:$0xf0] %v369
      %386 = vst [vmem:[%s185 + $0x8] sm:$0xf0] %v370
      %387 = vst [vmem:[%s185 + $0x10] sm:$0xf0] %v371
      %388 = vst [vmem:[%s185 + $0x18] sm:$0xf0] %v372
      %389 = vst [vmem:[%s185 + $0x20] sm:$0xf0] %v373
      %390 = vst [vmem:[%s185 + $0x28] sm:$0xf0] %v374
      %391 = vst [vmem:[%s185 + $0x30] sm:$0xf0] %v375
      %392 = vst [vmem:[%s185 + $0x38] sm:$0xf0] %v376
      %v393 = vld [vmem:[%s171] sm:$0xf0]
      %v394 = vld [vmem:[%s171 + $0x8] sm:$0xf0]
      %v395 = vld [vmem:[%s171 + $0x10] sm:$0xf0]
      %v396 = vld [vmem:[%s171 + $0x18] sm:$0xf0]
      %v397 = vld [vmem:[%s171 + $0x20] sm:$0xf0]
      %v398 = vld [vmem:[%s171 + $0x28] sm:$0xf0]
      %v399 = vld [vmem:[%s171 + $0x30] sm:$0xf0]
      %v400 = vld [vmem:[%s171 + $0x38] sm:$0xf0]
      %v409 = vrot.slane %v393, 4
      %v410 = vrot.slane %v394, 4
      %v411 = vrot.slane %v395, 4
      %v412 = vrot.slane %v396, 4
      %v413 = vrot.slane %v397, 4
      %v414 = vrot.slane %v398, 4
      %v415 = vrot.slane %v399, 4
      %v416 = vrot.slane %v400, 4
      %425 = vst [vmem:[%s185 + $0x40] sm:$0xf] %v409
      %426 = vst [vmem:[%s185 + $0x48] sm:$0xf] %v410
      %427 = vst [vmem:[%s185 + $0x50] sm:$0xf] %v411
      %428 = vst [vmem:[%s185 + $0x58] sm:$0xf] %v412
      %429 = vst [vmem:[%s185 + $0x60] sm:$0xf] %v413
      %430 = vst [vmem:[%s185 + $0x68] sm:$0xf] %v414
      %431 = vst [vmem:[%s185 + $0x70] sm:$0xf] %v415
      %432 = vst [vmem:[%s185 + $0x78] sm:$0xf] %v416
      %p433 = scmp.lt.s32.totalorder %s17, 1
      %s434 = scalar_select %p433, %s17, 1
      %p435 = scmp.lt.s32.totalorder %s18, 3
      %s436 = scalar_select %p435, %s18, 3
      %s437 = smul.addr %s436, 16
      %s438 = smul.addr %s434, 64
      %s439 = sadd.s32 %s437, %s438
      %s440 = smul.addr %s439, 8
      %s441 = scalar_lea.vmem %s2, %s440
      // Predicated region
      $region29: #{get_map_features_seq.1} parent=27 // pred_check
        %p442 = pneg %p97
      $region30: #{get_map_features_seq.1} parent=27 // pred_check_branch
        %444 = sbr.rel (%p442) target = $region32
      $region31: #{get_map_features_seq.1} parent=27 // pred_region
        _
      $region32: #{get_map_features_seq.1} parent=27 // pred_fallthru
        _
    $region28: #{get_map_features_seq.1} parent=5 // pred_fallthru
      _
    %p445 = scmp.le.s32.totalorder 2, %s8
    // Predicated region
    $region33: #{get_map_features_seq.1} parent=5 // pred_check
      %p446 = pneg %p445
    $region34: #{get_map_features_seq.1} parent=5 // pred_check_branch
      %448 = sbr.rel (%p446) target = $region36
    $region35: #{get_map_features_seq.1} parent=5 // pred_region
      %s449 = ssub.s32 %s8, 2
      // Predicated region
      $region37: #{get_map_features_seq.1} parent=35 // pred_check
        %p450 = pneg %p103
      $region38: #{get_map_features_seq.1} parent=35 // pred_check_branch
        %452 = sbr.rel (%p450) target = $region40
      $region39: #{get_map_features_seq.1} parent=35 // pred_region
        %p453 = scmp.lt.s32.totalorder %s19, 1
        %s454 = scalar_select %p453, %s19, 1
        %p455 = scmp.lt.s32.totalorder %s20, 3
        %s456 = scalar_select %p455, %s20, 3
        %s457 = smul.addr %s456, 16
        %s458 = smul.addr %s454, 64
        %s459 = sadd.s32 %s457, %s458
        %s460 = smul.addr %s459, 8
        %s461 = scalar_lea.vmem %s2, %s460
      $region40: #{get_map_features_seq.1} parent=35 // pred_fallthru
        _
    $region36: #{get_map_features_seq.1} parent=5 // pred_fallthru
      _
  $region6: #{get_map_features_seq.1} parent=0 // loop_footer
    %s12 = sadd.s32 1, %s8
  $region7: #{get_map_features_seq.1} parent=0 // loop_footer_branch
    %7 = sbr.rel target = $region3
  $region8: #{get_map_features_seq.1} parent=0 // loop_exit
    _

</llo_original>
